<compile_context>
chip_gen: v5e
topology: v5e:2x2
jax: 0.10.0
libtpu: 0.0.40
codegen_flags: <defaults>
</compile_context>

<pallas_src>
import functools

import jax
import jax.numpy as jnp
from jax.experimental import pallas as pl
from jax.experimental.pallas import tpu as pltpu

_EPS = 1e-8  # torch.nn.CosineSimilarity default eps (clamped per-norm)


def _round_up(v, m):
    return (v + m - 1) // m * m


def _cos_sim_kernel(x_ref, y_ref, o_ref, xscale_ref, *, inv_temp, eps):
    eps2 = eps * eps

    # The x tile is constant across the j (M-tile) axis: compute its row
    # scales (inv_temp / max(||x||, eps)) once per i-tile, stash in VMEM.
    @pl.when(pl.program_id(1) == 0)
    def _():
        xf = x_ref[...].astype(jnp.float32)
        x_ssq = jnp.sum(xf * xf, axis=-1, keepdims=True)            # (TN, 1)
        xscale_ref[...] = jax.lax.rsqrt(jnp.maximum(x_ssq, eps2)) * inv_temp

    yf = y_ref[...].astype(jnp.float32)
    y_ssq = jnp.sum(yf * yf, axis=-1, keepdims=True)                # (TM, 1)
    y_scale = jax.lax.rsqrt(jnp.maximum(y_ssq, eps2))               # (TM, 1)

    # Pairwise dot products on the MXU, contracting the last dim of both
    # operands (no explicit y.T).  Native input dtype feeds the MXU; f32 acc.
    dots = jax.lax.dot_general(
        x_ref[...], y_ref[...],
        dimension_numbers=(((1,), (1,)), ((), ())),
        preferred_element_type=jnp.float32)                         # (TN, TM)

    o_ref[...] = (dots * xscale_ref[...] * y_scale.T).astype(o_ref.dtype)


def similarity(x, y, temp, *, tile_n=256, tile_m=512):
    """Pallas equivalent of Similarity(temp)(x, y).

    x: (N, 1, H) or (N, H);  y: (1, M, H) or (M, H).  Returns (N, M) float32.
    """
    # Squeeze the SimCSE broadcast dims down to 2-D slabs (feature dim last).
    if x.ndim == 3:
        x2 = x[:, 0, :] if x.shape[1] == 1 else x.reshape(-1, x.shape[-1])
    else:
        x2 = x
    if y.ndim == 3:
        y2 = y[0, :, :] if y.shape[0] == 1 else y.reshape(-1, y.shape[-1])
    else:
        y2 = y

    n, h = x2.shape
    m, h2 = y2.shape
    assert h == h2, "feature dims must match"
    itemsize = jnp.dtype(x2.dtype).itemsize

    # Tile sizes: lane-dense output (TILE_M % 128 == 0), sublane-aligned rows
    # (TILE_N % 8 == 0), clamped to the (padded) problem size.
    tn = _round_up(min(tile_n, _round_up(n, 8)), 8)
    tm = _round_up(min(tile_m, _round_up(m, 128)), 128)

    # Keep the double-buffered working set within a budget that is safe even
    # on v7x (64 MiB physical VMEM).
    budget = 40 * 1024 * 1024

    def _est(a, b):
        return 2 * (a + b) * h * itemsize + 2 * a * b * 4

    while _est(tn, tm) > budget and tm > 128:
        tm = max(128, _round_up(tm // 2, 128))
    while _est(tn, tm) > budget and tn > 8:
        tn = max(8, _round_up(tn // 2, 8))

    n_pad = _round_up(n, tn)
    m_pad = _round_up(m, tm)
    if n_pad != n:
        x2 = jnp.pad(x2, ((0, n_pad - n), (0, 0)))
    if m_pad != m:
        y2 = jnp.pad(y2, ((0, m_pad - m), (0, 0)))

    grid = (n_pad // tn, m_pad // tm)

    vmem_limit = int(max(_est(tn, tm) + (2 << 20), 32 * 1024 * 1024))

    cost = pl.CostEstimate(
        flops=2 * n_pad * m_pad * h,
        transcendentals=n_pad + m_pad * (n_pad // tn),
        bytes_accessed=(n_pad * h + m_pad * h) * itemsize + n_pad * m_pad * 4,
    )

    kernel = functools.partial(
        _cos_sim_kernel, inv_temp=1.0 / float(temp), eps=_EPS)

    out = pl.pallas_call(
        kernel,
        out_shape=jax.ShapeDtypeStruct((n_pad, m_pad), jnp.float32),
        grid_spec=pltpu.PrefetchScalarGridSpec(
            num_scalar_prefetch=0,
            grid=grid,
            in_specs=[
                pl.BlockSpec((tn, h), lambda i, j: (i, 0)),
                pl.BlockSpec((tm, h), lambda i, j: (j, 0)),
            ],
            out_specs=pl.BlockSpec((tn, tm), lambda i, j: (i, j)),
            scratch_shapes=[pltpu.VMEM((tn, 1), jnp.float32)],
        ),
        compiler_params=pltpu.CompilerParams(
            dimension_semantics=("parallel", "arbitrary"),
            vmem_limit_bytes=vmem_limit,
        ),
        cost_estimate=cost,
    )(x2, y2)

    return out[:n, :m]


def _reference(x, y, temp):
    xr = x[:, 0, :] if x.ndim == 3 else x
    yr = y[0, :, :] if y.ndim == 3 else y
    xn = jnp.maximum(jnp.linalg.norm(xr, axis=-1, keepdims=True), _EPS)
    yn = jnp.maximum(jnp.linalg.norm(yr, axis=-1, keepdims=True), _EPS)
    return ((xr / xn) @ (yr / yn).T) / temp


if __name__ == "__main__":
    key = jax.random.PRNGKey(0)
    k1, k2, k3, k4 = jax.random.split(key, 4)
    temp = 0.05  # typical SimCSE temperature

    # Test 1: the canonical SimCSE call pattern, single-tile path.
    N, M, H = 8, 8, 32
    x = jax.random.normal(k1, (N, 1, H), dtype=jnp.float32)
    y = jax.random.normal(k2, (1, M, H), dtype=jnp.float32)
    out = jax.block_until_ready(similarity(x, y, temp))
    ref = _reference(x, y, temp)
    assert out.shape == (N, M)
    assert jnp.allclose(out, ref, atol=1e-3, rtol=1e-3), "test 1 mismatch"

    # Test 2: small tiles to exercise the multi-tile grid, padding/slicing,
    # and the j==0 scratch reuse path.
    N2, M2, H2 = 24, 300, 128
    x2 = jax.random.normal(k3, (N2, 1, H2), dtype=jnp.float32)
    y2 = jax.random.normal(k4, (1, M2, H2), dtype=jnp.float32)
    out2 = jax.block_until_ready(similarity(x2, y2, temp, tile_n=16, tile_m=128))
    ref2 = _reference(x2, y2, temp)
    assert out2.shape == (N2, M2)
    assert jnp.allclose(out2, ref2, atol=1e-3, rtol=1e-3), "test 2 mismatch"

    print("KERNEL_OK")
</pallas_src>

<mosaic_0001>
module attributes {stable_mosaic.version = 11 : i64} {
  func.func @_cos_sim_kernel(%arg0: i32, %arg1: i32, %arg2: memref<8x32xf32, #tpu.memory_space<vmem>>, %arg3: memref<128x32xf32, #tpu.memory_space<vmem>>, %arg4: memref<8x128xf32, #tpu.memory_space<vmem>>, %arg5: memref<8x1xf32, #tpu.memory_space<vmem>>) attributes {dimension_semantics = [#tpu.dimension_semantics<parallel>, #tpu.dimension_semantics<arbitrary>], iteration_bounds = array<i64: 1, 1>, scalar_prefetch = 0 : i64, scratch_operands = 1 : i64, tpu.core_type = #tpu.core_type<tc>, window_params = [{transform_indices = @transform_0, window_bounds = array<i64: 8, 32>}, {transform_indices = @transform_1, window_bounds = array<i64: 128, 32>}, {transform_indices = @transform_2, window_bounds = array<i64: 8, 128>}]} {
    %c0_i32 = arith.constant 0 : i32
    %0 = arith.cmpi eq, %arg1, %c0_i32 : i32
    %1 = arith.extui %0 : i1 to i32
    %c0_i32_0 = arith.constant 0 : i32
    %2 = arith.cmpi ne, %1, %c0_i32_0 : i32
    scf.if %2 {
      %c0_12 = arith.constant 0 : index
      %c0_13 = arith.constant 0 : index
      %20 = vector.load %arg2[%c0_12, %c0_13] : memref<8x32xf32, #tpu.memory_space<vmem>>, vector<8x32xf32>
      %21 = arith.mulf %20, %20 : vector<8x32xf32>
      %cst_14 = arith.constant dense<0.000000e+00> : vector<8xf32>
      %22 = vector.multi_reduction <add>, %21, %cst_14 [1] : vector<8x32xf32> to vector<8xf32>
      %23 = vector.shape_cast %22 : vector<8xf32> to vector<8x1xf32>
      %cst_15 = arith.constant 1.000000e-16 : f32
      %24 = vector.broadcast %cst_15 : f32 to vector<8x1xf32>
      %25 = arith.maximumf %23, %24 : vector<8x1xf32>
      %26 = math.rsqrt %25 : vector<8x1xf32>
      %cst_16 = arith.constant 2.000000e+01 : f32
      %27 = vector.broadcast %cst_16 : f32 to vector<8x1xf32>
      %28 = arith.mulf %26, %27 : vector<8x1xf32>
      %c0_17 = arith.constant 0 : index
      %c0_18 = arith.constant 0 : index
      %29 = vector.load %arg5[%c0_17, %c0_18] : memref<8x1xf32, #tpu.memory_space<vmem>>, vector<8x1xf32>
      tpu.vector_store %arg5[%c0_17, %c0_18], %28 {strides = array<i32>} : memref<8x1xf32, #tpu.memory_space<vmem>>, vector<8x1xf32>,
    } else {
    }
    %c0 = arith.constant 0 : index
    %c0_1 = arith.constant 0 : index
    %3 = vector.load %arg3[%c0, %c0_1] : memref<128x32xf32, #tpu.memory_space<vmem>>, vector<128x32xf32>
    %4 = arith.mulf %3, %3 : vector<128x32xf32>
    %cst = arith.constant dense<0.000000e+00> : vector<128xf32>
    %5 = vector.multi_reduction <add>, %4, %cst [1] : vector<128x32xf32> to vector<128xf32>
    %6 = vector.shape_cast %5 : vector<128xf32> to vector<128x1xf32>
    %cst_2 = arith.constant 1.000000e-16 : f32
    %7 = vector.broadcast %cst_2 : f32 to vector<128x1xf32>
    %8 = arith.maximumf %6, %7 : vector<128x1xf32>
    %9 = math.rsqrt %8 : vector<128x1xf32>
    %c0_3 = arith.constant 0 : index
    %c0_4 = arith.constant 0 : index
    %10 = vector.load %arg2[%c0_3, %c0_4] : memref<8x32xf32, #tpu.memory_space<vmem>>, vector<8x32xf32>
    %c0_5 = arith.constant 0 : index
    %c0_6 = arith.constant 0 : index
    %11 = vector.load %arg3[%c0_5, %c0_6] : memref<128x32xf32, #tpu.memory_space<vmem>>, vector<128x32xf32>
    %cst_7 = arith.constant dense<0.000000e+00> : vector<8x128xf32>
    %12 = tpu.matmul %10, %11, %cst_7 {dimension_numbers = #tpu.dot_dimension_numbers<[1], [1], [0], [0], [0, 0, 1, 0], [], []>} : vector<8x32xf32>, vector<128x32xf32>, vector<8x128xf32> -> vector<8x128xf32>
    %c0_8 = arith.constant 0 : index
    %c0_9 = arith.constant 0 : index
    %13 = vector.load %arg5[%c0_8, %c0_9] : memref<8x1xf32, #tpu.memory_space<vmem>>, vector<8x1xf32>
    %14 = vector.broadcast %13 : vector<8x1xf32> to vector<8x128xf32>
    %15 = arith.mulf %12, %14 : vector<8x128xf32>
    %16 = tpu.transpose %9, [1, 0] : vector<128x1xf32> -> vector<1x128xf32>
    %17 = vector.broadcast %16 : vector<1x128xf32> to vector<8x128xf32>
    %18 = arith.mulf %15, %17 : vector<8x128xf32>
    %c0_10 = arith.constant 0 : index
    %c0_11 = arith.constant 0 : index
    %19 = vector.load %arg4[%c0_10, %c0_11] : memref<8x128xf32, #tpu.memory_space<vmem>>, vector<8x128xf32>
    tpu.vector_store %arg4[%c0_10, %c0_11], %18 {strides = array<i32>} : memref<8x128xf32, #tpu.memory_space<vmem>>, vector<8x128xf32>,
    return
  }
  func.func @transform_0(%arg0: i32, %arg1: i32) -> (i32, i32) {
    %c0_i32 = arith.constant 0 : i32
    %c0_i32_0 = arith.constant 0 : i32
    return %arg0, %c0_i32 : i32, i32
  }
  func.func @transform_1(%arg0: i32, %arg1: i32) -> (i32, i32) {
    %c0_i32 = arith.constant 0 : i32
    %c0_i32_0 = arith.constant 0 : i32
    return %arg1, %c0_i32 : i32, i32
  }
  func.func @transform_2(%arg0: i32, %arg1: i32) -> (i32, i32) {
    %c0_i32 = arith.constant 0 : i32
    return %arg0, %arg1 : i32, i32
  }
}

</mosaic_0001>

<llo_original>
// kernel: tpu_custom_call.1
$region0: #{tpu_custom_call.1}
  #allocation0 [shape = 'u32[]', space=smem, size = 0x4, offset = 0x4, fixed_abs, tag = 'smem constant byte address 0x4 - core index']
  #allocation1 [shape = 'u32[72,128]{1,0:T(1,128)}', space=vmem, size = 0x9000, scoped, tag = 'internal scratch']
  #allocation2 [shape = 'f32[8,1]{1,0:T(8,128)}', space=vmem, size = 0x1000, scoped, tag = 'scratch operand']
  %s0 = inlined_call_operand.vmem [shape: f32[8,32], index: 0, kind: input, shape index: {}]
  %s1 = inlined_call_operand.vmem [shape: f32[128,32], index: 1, kind: input, shape index: {}]
  %s2 = inlined_call_operand.hbm [shape: f32[8,128], index: 2, kind: output, shape index: {}]
  %s3 = sld [smem:[#allocation0]]
  $region22: #{tpu_custom_call.1} parent=0
    _
  %s5 = ssub.s32 1, %s3
  %s6 = scalar_select 0, %s5, %s3
  $region1: #{tpu_custom_call.1} parent=0
    #allocation3 [shape = 'u8[4096]{0}', space=vmem, size = 0x1000, scoped, tag = 'output window, operand 0, single buffered']
    #allocation4 [shape = 's32[1]{0}', space=sflag, size = 0x4, scoped, tag = 'scoped memory for tpu_custom_call.1']
    %7 = vsyncpa [#allocation4], 0
    // Predicated region
    $region2: #{tpu_custom_call.1} parent=1 // pred_check
      _
    $region3: #{tpu_custom_call.1} parent=1 // pred_check_branch
      %9 = sbr.rel (0) target = $region5
    $region4: #{tpu_custom_call.1} parent=1 // pred_region
      _
    $region5: #{tpu_custom_call.1} parent=1 // pred_fallthru
      _
    // Predicated region
    $region6: #{tpu_custom_call.1} parent=1 // pred_check
      _
    $region7: #{tpu_custom_call.1} parent=1 // pred_check_branch
      %11 = sbr.rel (0) target = $region9
    $region8: #{tpu_custom_call.1} parent=1 // pred_region
      _
    $region9: #{tpu_custom_call.1} parent=1 // pred_fallthru
      _
    %p12 = scmp.eq.s32.totalorder 0, 0
    // Predicated region
    $region10: #{tpu_custom_call.1} parent=1 // pred_check
      %p13 = pneg %p12
    $region11: #{tpu_custom_call.1} parent=1 // pred_check_branch
      %15 = sbr.rel (%p13) target = $region13
    $region12: #{tpu_custom_call.1} parent=1 // pred_region
      %v16 = vld [vmem:[%s0] sm:$0xff]
      %v17 = vmul.f32 %v16, %v16
      %vm18 = vcmask 261120
      %v19 = vsel %vm18, %v17, 0.0
      %20 = vadd.xlane.f32.xlu0 %v19
      %v21 = vpop.xlane.xlu0 %20
      %v22 = vmax.f32 %v21, 1e-16
      %v23 = vrsqrt.pop %v22
      %v24 = vmul.f32 %v23, %v22
      %v25 = vmul.f32 %v24, %v23
      %v26 = vmul.f32 0.5, %v25
      %v27 = vsub.f32 1.5, %v26
      %v28 = vmul.f32 %v23, %v27
      %vm29 = vweird.f32 %v22
      %vm30 = vweird.f32 %v23
      %vm31 = vmor %vm29, %vm30
      %v32 = vsel %vm31, %v23, %v28
      %v33 = vmul.f32 %v32, 20.0
      %vm34 = vcmask 7168
      %35 = vst.msk [vmem:[#allocation2] sm:$0xff] %vm34, %v33
    $region13: #{tpu_custom_call.1} parent=1 // pred_fallthru
      _
    %v36 = vld [vmem:[%s1] sm:$0xff]
    %v37 = vld [vmem:[%s1 + $0x8] sm:$0xff]
    %v38 = vld [vmem:[%s1 + $0x10] sm:$0xff]
    %v39 = vld [vmem:[%s1 + $0x18] sm:$0xff]
    %v40 = vld [vmem:[%s1 + $0x20] sm:$0xff]
    %v41 = vld [vmem:[%s1 + $0x28] sm:$0xff]
    %v42 = vld [vmem:[%s1 + $0x30] sm:$0xff]
    %v43 = vld [vmem:[%s1 + $0x38] sm:$0xff]
    %v44 = vld [vmem:[%s1 + $0x40] sm:$0xff]
    %v45 = vld [vmem:[%s1 + $0x48] sm:$0xff]
    %v46 = vld [vmem:[%s1 + $0x50] sm:$0xff]
    %v47 = vld [vmem:[%s1 + $0x58] sm:$0xff]
    %v48 = vld [vmem:[%s1 + $0x60] sm:$0xff]
    %v49 = vld [vmem:[%s1 + $0x68] sm:$0xff]
    %v50 = vld [vmem:[%s1 + $0x70] sm:$0xff]
    %v51 = vld [vmem:[%s1 + $0x78] sm:$0xff]
    %v52 = vmul.f32 %v36, %v36
    %v53 = vmul.f32 %v37, %v37
    %v54 = vmul.f32 %v38, %v38
    %v55 = vmul.f32 %v39, %v39
    %v56 = vmul.f32 %v40, %v40
    %v57 = vmul.f32 %v41, %v41
    %v58 = vmul.f32 %v42, %v42
    %v59 = vmul.f32 %v43, %v43
    %v60 = vmul.f32 %v44, %v44
    %v61 = vmul.f32 %v45, %v45
    %v62 = vmul.f32 %v46, %v46
    %v63 = vmul.f32 %v47, %v47
    %v64 = vmul.f32 %v48, %v48
    %v65 = vmul.f32 %v49, %v49
    %v66 = vmul.f32 %v50, %v50
    %v67 = vmul.f32 %v51, %v51
    %vm68 = vcmask 261120
    %v69 = vsel %vm68, %v52, 0.0
    %70 = vadd.xlane.f32.xlu0 %v69
    %v71 = vpop.xlane.xlu0 %70
    %v72 = vsel %vm68, %v53, 0.0
    %73 = vadd.xlane.f32.xlu0 %v72
    %v74 = vpop.xlane.xlu0 %73
    %v75 = vsel %vm68, %v54, 0.0
    %76 = vadd.xlane.f32.xlu0 %v75
    %v77 = vpop.xlane.xlu0 %76
    %v78 = vsel %vm68, %v55, 0.0
    %79 = vadd.xlane.f32.xlu0 %v78
    %v80 = vpop.xlane.xlu0 %79
    %v81 = vsel %vm68, %v56, 0.0
    %82 = vadd.xlane.f32.xlu0 %v81
    %v83 = vpop.xlane.xlu0 %82
    %v84 = vsel %vm68, %v57, 0.0
    %85 = vadd.xlane.f32.xlu0 %v84
    %v86 = vpop.xlane.xlu0 %85
    %v87 = vsel %vm68, %v58, 0.0
    %88 = vadd.xlane.f32.xlu0 %v87
    %v89 = vpop.xlane.xlu0 %88
    %v90 = vsel %vm68, %v59, 0.0
    %91 = vadd.xlane.f32.xlu0 %v90
    %v92 = vpop.xlane.xlu0 %91
    %v93 = vsel %vm68, %v60, 0.0
    %94 = vadd.xlane.f32.xlu0 %v93
    %v95 = vpop.xlane.xlu0 %94
    %v96 = vsel %vm68, %v61, 0.0
    %97 = vadd.xlane.f32.xlu0 %v96
    %v98 = vpop.xlane.xlu0 %97
    %v99 = vsel %vm68, %v62, 0.0
    %100 = vadd.xlane.f32.xlu0 %v99
    %v101 = vpop.xlane.xlu0 %100
    %v102 = vsel %vm68, %v63, 0.0
    %103 = vadd.xlane.f32.xlu0 %v102
    %v104 = vpop.xlane.xlu0 %103
    %v105 = vsel %vm68, %v64, 0.0
    %106 = vadd.xlane.f32.xlu0 %v105
    %v107 = vpop.xlane.xlu0 %106
    %v108 = vsel %vm68, %v65, 0.0
    %109 = vadd.xlane.f32.xlu0 %v108
    %v110 = vpop.xlane.xlu0 %109
    %v111 = vsel %vm68, %v66, 0.0
    %112 = vadd.xlane.f32.xlu0 %v111
    %v113 = vpop.xlane.xlu0 %112
    %v114 = vsel %vm68, %v67, 0.0
    %115 = vadd.xlane.f32.xlu0 %v114
    %v116 = vpop.xlane.xlu0 %115
    %v117 = vmax.f32 %v71, 1e-16
    %v118 = vmax.f32 %v74, 1e-16
    %v119 = vmax.f32 %v77, 1e-16
    %v120 = vmax.f32 %v80, 1e-16
    %v121 = vmax.f32 %v83, 1e-16
    %v122 = vmax.f32 %v86, 1e-16
    %v123 = vmax.f32 %v89, 1e-16
    %v124 = vmax.f32 %v92, 1e-16
    %v125 = vmax.f32 %v95, 1e-16
    %v126 = vmax.f32 %v98, 1e-16
    %v127 = vmax.f32 %v101, 1e-16
    %v128 = vmax.f32 %v104, 1e-16
    %v129 = vmax.f32 %v107, 1e-16
    %v130 = vmax.f32 %v110, 1e-16
    %v131 = vmax.f32 %v113, 1e-16
    %v132 = vmax.f32 %v116, 1e-16
    %v133 = vrsqrt.pop %v117
    %v134 = vmul.f32 %v133, %v117
    %v135 = vmul.f32 %v134, %v133
    %v136 = vmul.f32 0.5, %v135
    %v137 = vsub.f32 1.5, %v136
    %v138 = vmul.f32 %v133, %v137
    %vm139 = vweird.f32 %v117
    %vm140 = vweird.f32 %v133
    %vm141 = vmor %vm139, %vm140
    %v142 = vsel %vm141, %v133, %v138
    %v143 = vrsqrt.pop %v118
    %v144 = vmul.f32 %v143, %v118
    %v145 = vmul.f32 %v144, %v143
    %v146 = vmul.f32 0.5, %v145
    %v147 = vsub.f32 1.5, %v146
    %v148 = vmul.f32 %v143, %v147
    %vm149 = vweird.f32 %v118
    %vm150 = vweird.f32 %v143
    %vm151 = vmor %vm149, %vm150
    %v152 = vsel %vm151, %v143, %v148
    %v153 = vrsqrt.pop %v119
    %v154 = vmul.f32 %v153, %v119
    %v155 = vmul.f32 %v154, %v153
    %v156 = vmul.f32 0.5, %v155
    %v157 = vsub.f32 1.5, %v156
    %v158 = vmul.f32 %v153, %v157
    %vm159 = vweird.f32 %v119
    %vm160 = vweird.f32 %v153
    %vm161 = vmor %vm159, %vm160
    %v162 = vsel %vm161, %v153, %v158
    %v163 = vrsqrt.pop %v120
    %v164 = vmul.f32 %v163, %v120
    %v165 = vmul.f32 %v164, %v163
    %v166 = vmul.f32 0.5, %v165
    %v167 = vsub.f32 1.5, %v166
    %v168 = vmul.f32 %v163, %v167
    %vm169 = vweird.f32 %v120
    %vm170 = vweird.f32 %v163
    %vm171 = vmor %vm169, %vm170
    %v172 = vsel %vm171, %v163, %v168
    %v173 = vrsqrt.pop %v121
    %v174 = vmul.f32 %v173, %v121
    %v175 = vmul.f32 %v174, %v173
    %v176 = vmul.f32 0.5, %v175
    %v177 = vsub.f32 1.5, %v176
    %v178 = vmul.f32 %v173, %v177
    %vm179 = vweird.f32 %v121
    %vm180 = vweird.f32 %v173
    %vm181 = vmor %vm179, %vm180
    %v182 = vsel %vm181, %v173, %v178
    %v183 = vrsqrt.pop %v122
    %v184 = vmul.f32 %v183, %v122
    %v185 = vmul.f32 %v184, %v183
    %v186 = vmul.f32 0.5, %v185
    %v187 = vsub.f32 1.5, %v186
    %v188 = vmul.f32 %v183, %v187
    %vm189 = vweird.f32 %v122
    %vm190 = vweird.f32 %v183
    %vm191 = vmor %vm189, %vm190
    %v192 = vsel %vm191, %v183, %v188
    %v193 = vrsqrt.pop %v123
    %v194 = vmul.f32 %v193, %v123
    %v195 = vmul.f32 %v194, %v193
    %v196 = vmul.f32 0.5, %v195
    %v197 = vsub.f32 1.5, %v196
    %v198 = vmul.f32 %v193, %v197
    %vm199 = vweird.f32 %v123
    %vm200 = vweird.f32 %v193
    %vm201 = vmor %vm199, %vm200
    %v202 = vsel %vm201, %v193, %v198
    %v203 = vrsqrt.pop %v124
    %v204 = vmul.f32 %v203, %v124
    %v205 = vmul.f32 %v204, %v203
    %v206 = vmul.f32 0.5, %v205
    %v207 = vsub.f32 1.5, %v206
    %v208 = vmul.f32 %v203, %v207
    %vm209 = vweird.f32 %v124
    %vm210 = vweird.f32 %v203
    %vm211 = vmor %vm209, %vm210
    %v212 = vsel %vm211, %v203, %v208
    %v213 = vrsqrt.pop %v125
    %v214 = vmul.f32 %v213, %v125
    %v215 = vmul.f32 %v214, %v213
    %v216 = vmul.f32 0.5, %v215
    %v217 = vsub.f32 1.5, %v216
    %v218 = vmul.f32 %v213, %v217
    %vm219 = vweird.f32 %v125
    %vm220 = vweird.f32 %v213
    %vm221 = vmor %vm219, %vm220
    %v222 = vsel %vm221, %v213, %v218
    %v223 = vrsqrt.pop %v126
    %v224 = vmul.f32 %v223, %v126
    %v225 = vmul.f32 %v224, %v223
    %v226 = vmul.f32 0.5, %v225
    %v227 = vsub.f32 1.5, %v226
    %v228 = vmul.f32 %v223, %v227
    %vm229 = vweird.f32 %v126
    %vm230 = vweird.f32 %v223
    %vm231 = vmor %vm229, %vm230
    %v232 = vsel %vm231, %v223, %v228
    %v233 = vrsqrt.pop %v127
    %v234 = vmul.f32 %v233, %v127
    %v235 = vmul.f32 %v234, %v233
    %v236 = vmul.f32 0.5, %v235
    %v237 = vsub.f32 1.5, %v236
    %v238 = vmul.f32 %v233, %v237
    %vm239 = vweird.f32 %v127
    %vm240 = vweird.f32 %v233
    %vm241 = vmor %vm239, %vm240
    %v242 = vsel %vm241, %v233, %v238
    %v243 = vrsqrt.pop %v128
    %v244 = vmul.f32 %v243, %v128
    %v245 = vmul.f32 %v244, %v243
    %v246 = vmul.f32 0.5, %v245
    %v247 = vsub.f32 1.5, %v246
    %v248 = vmul.f32 %v243, %v247
    %vm249 = vweird.f32 %v128
    %vm250 = vweird.f32 %v243
    %vm251 = vmor %vm249, %vm250
    %v252 = vsel %vm251, %v243, %v248
    %v253 = vrsqrt.pop %v129
    %v254 = vmul.f32 %v253, %v129
    %v255 = vmul.f32 %v254, %v253
    %v256 = vmul.f32 0.5, %v255
    %v257 = vsub.f32 1.5, %v256
    %v258 = vmul.f32 %v253, %v257
    %vm259 = vweird.f32 %v129
    %vm260 = vweird.f32 %v253
    %vm261 = vmor %vm259, %vm260
    %v262 = vsel %vm261, %v253, %v258
    %v263 = vrsqrt.pop %v130
    %v264 = vmul.f32 %v263, %v130
    %v265 = vmul.f32 %v264, %v263
    %v266 = vmul.f32 0.5, %v265
    %v267 = vsub.f32 1.5, %v266
    %v268 = vmul.f32 %v263, %v267
    %vm269 = vweird.f32 %v130
    %vm270 = vweird.f32 %v263
    %vm271 = vmor %vm269, %vm270
    %v272 = vsel %vm271, %v263, %v268
    %v273 = vrsqrt.pop %v131
    %v274 = vmul.f32 %v273, %v131
    %v275 = vmul.f32 %v274, %v273
    %v276 = vmul.f32 0.5, %v275
    %v277 = vsub.f32 1.5, %v276
    %v278 = vmul.f32 %v273, %v277
    %vm279 = vweird.f32 %v131
    %vm280 = vweird.f32 %v273
    %vm281 = vmor %vm279, %vm280
    %v282 = vsel %vm281, %v273, %v278
    %v283 = vrsqrt.pop %v132
    %v284 = vmul.f32 %v283, %v132
    %v285 = vmul.f32 %v284, %v283
    %v286 = vmul.f32 0.5, %v285
    %v287 = vsub.f32 1.5, %v286
    %v288 = vmul.f32 %v283, %v287
    %vm289 = vweird.f32 %v132
    %vm290 = vweird.f32 %v283
    %vm291 = vmor %vm289, %vm290
    %v292 = vsel %vm291, %v283, %v288
    %v293 = vld [vmem:[%s0] sm:$0xff]
    %v295 = vsel %vm68, %v293, 0
    %v298 = vsel %vm68, %v36, 0
    %v301 = vsel %vm68, %v37, 0
    %v304 = vsel %vm68, %v38, 0
    %v307 = vsel %vm68, %v39, 0
    %v310 = vsel %vm68, %v40, 0
    %v313 = vsel %vm68, %v41, 0
    %v316 = vsel %vm68, %v42, 0
    %v319 = vsel %vm68, %v43, 0
    %v322 = vsel %vm68, %v44, 0
    %v325 = vsel %vm68, %v45, 0
    %v328 = vsel %vm68, %v46, 0
    %v331 = vsel %vm68, %v47, 0
    %v334 = vsel %vm68, %v48, 0
    %v337 = vsel %vm68, %v49, 0
    %v340 = vsel %vm68, %v50, 0
    %v343 = vsel %vm68, %v51, 0
    %345 = vmatpush.xpose.msra.mxu0 %v343
    %346 = vmatpush.xpose.msra.mxu0 %v340
    %347 = vmatpush.xpose.msra.mxu0 %v337
    %348 = vmatpush.xpose.msra.mxu0 %v334
    %349 = vmatpush.xpose.msra.mxu0 %v331
    %350 = vmatpush.xpose.msra.mxu0 %v328
    %351 = vmatpush.xpose.msra.mxu0 %v325
    %352 = vmatpush.xpose.msra.mxu0 %v322
    %353 = vmatpush.xpose.msra.mxu0 %v319
    %354 = vmatpush.xpose.msra.mxu0 %v316
    %355 = vmatpush.xpose.msra.mxu0 %v313
    %356 = vmatpush.xpose.msra.mxu0 %v310
    %357 = vmatpush.xpose.msra.mxu0 %v307
    %358 = vmatpush.xpose.msra.mxu0 %v304
    %359 = vmatpush.xpose.msra.mxu0 %v301
    %360 = vmatpush.xpose.msra.mxu0 %v298
    %361 = vmatmul.f32.gmra.mxu0 %v295
    %v362 = vpop.f32.mrf.mxu0
    %v363 = vadd.f32 0.0, %v362
    %364 = vdwg.mxu0
    %v365 = vld [vmem:[#allocation2] sm:$0xff]
    %367 = vset.pattern.permute.xlu0 0
    %368 = vperm.xlu0 %367, %v365
    %v369 = vpop.permute.xlu0 %368
    %v371 = vmul.f32 %v363, %v369
    %372 = vxpose.xlu0.b32.start [1/16] %v142, 128
    %373 = vxpose.xlu0.b32.cont [2/16] %v152, 128
    %374 = vxpose.xlu0.b32.cont [3/16] %v162, 128
    %375 = vxpose.xlu0.b32.cont [4/16] %v172, 128
    %376 = vxpose.xlu0.b32.cont [5/16] %v182, 128
    %377 = vxpose.xlu0.b32.cont [6/16] %v192, 128
    %378 = vxpose.xlu0.b32.cont [7/16] %v202, 128
    %379 = vxpose.xlu0.b32.cont [8/16] %v212, 128
    %380 = vxpose.xlu0.b32.cont [9/16] %v222, 128
    %381 = vxpose.xlu0.b32.cont [10/16] %v232, 128
    %382 = vxpose.xlu0.b32.cont [11/16] %v242, 128
    %383 = vxpose.xlu0.b32.cont [12/16] %v252, 128
    %384 = vxpose.xlu0.b32.cont [13/16] %v262, 128
    %385 = vxpose.xlu0.b32.cont [14/16] %v272, 128
    %386 = vxpose.xlu0.b32.cont [15/16] %v282, 128
    %387 = vxpose.xlu0.b32.end [16/16] %v292, 128
    %v388 = vpop.trf.xlu0
    %v389 = vpop.trf.xlu0
    %v390 = vpop.trf.xlu0
    %v391 = vpop.trf.xlu0
    %v392 = vpop.trf.xlu0
    %v393 = vpop.trf.xlu0
    %v394 = vpop.trf.xlu0
    %v395 = vpop.trf.xlu0
    %v396 = vpop.trf.xlu0
    %v397 = vpop.trf.xlu0
    %v398 = vpop.trf.xlu0
    %v399 = vpop.trf.xlu0
    %v400 = vpop.trf.xlu0
    %v401 = vpop.trf.xlu0
    %v402 = vpop.trf.xlu0
    %v403 = vpop.trf.xlu0
    %v404 = vperm.slane %v388, 0
    %v405 = vmul.f32 %v371, %v404
    %406 = vst [vmem:[#allocation3] sm:$0xff] %v405
    // Predicated region
    $region14: #{tpu_custom_call.1} parent=1 // pred_check
      _
    $region15: #{tpu_custom_call.1} parent=1 // pred_check_branch
      %408 = sbr.rel (0) target = $region17
    $region16: #{tpu_custom_call.1} parent=1 // pred_region
      %410 = vsyncadd [#allocation4], 0
      %s412 = sshll.u32 [#allocation3], 4
      %s413 = int_to_ptr.vmem [resolvable:$true] %s412
      %s414 = sshll.u32 %s2, 4
      %s415 = int_to_ptr.hbm [resolvable:$true] %s414
      %417 = dma.vmem_to_hbm [thread:$0]  %s413, 128, %s415, [#allocation4]
    $region17: #{tpu_custom_call.1} parent=1 // pred_fallthru
      _
    // Predicated region
    $region18: #{tpu_custom_call.1} parent=1 // pred_check
      _
    $region19: #{tpu_custom_call.1} parent=1 // pred_check_branch
      %419 = sbr.rel (0) target = $region21
    $region20: #{tpu_custom_call.1} parent=1 // pred_region
      %421 = dma.done [#allocation4], 128
    $region21: #{tpu_custom_call.1} parent=1 // pred_fallthru
      _
    %422 = vsyncpa [#allocation4], 1

</llo_original>
